<compile_context>
chip_gen: v5e
topology: v5e:2x2
jax: 0.10.0
libtpu: 0.0.40
codegen_flags: <defaults>
</compile_context>

<pallas_src>
import functools

import jax
import jax.numpy as jnp
from jax.experimental import pallas as pl
from jax.experimental.pallas import tpu as pltpu

_LANE = 128
_MIB = 1024 * 1024


def _irnn_kernel(p_ref, x_ref, up_ref, right_ref, down_ref, left_ref,
                 *, W, HW, HWp):
    x = x_ref[...]          # (Bb, HWp) : Bb flattened (n, c) slabs, lane-dense
    p = p_ref[...]          # (Bb, 8)   : [wl, bl, wr, br, wu, bu, wd, bd]

    wl, bl = p[:, 0:1], p[:, 1:2]
    wr, br = p[:, 2:3], p[:, 3:4]
    wu, bu = p[:, 4:5], p[:, 5:6]
    wd, bd = p[:, 6:7], p[:, 7:8]

    # Boundary masks on a single (1, HWp) row; jnp.where broadcasts them over
    # the sublane axis, so the iota/mod/compare work is negligible VPU filler.
    f = jax.lax.broadcasted_iota(jnp.int32, (1, HWp), 1)
    col = f % W                      # W pow-of-2 lowers to AND; tiny otherwise
    first_col = col == 0             # w == 0        (top_left boundary)
    last_col = col == (W - 1)        # w == W-1      (top_right boundary)
    first_row = f < W                # h == 0        (top_up boundary)
    last_row = f >= (HW - W)         # h == H-1      (top_down boundary)

    # Depthwise 1x1 conv == per-slab affine: lane-broadcast FMA.
    yl = wl * x + bl
    yr = wr * x + br
    yu = wu * x + bu
    yd = wd * x + bd

    # pltpu.roll follows np.roll semantics: result[i] = src[i - shift].
    # Wrap-around values only land on boundary/pad lanes overwritten below.
    left = jnp.where(first_col, x,
                     jnp.maximum(pltpu.roll(yl, shift=1, axis=1) + x, 0.0))
    right = jnp.where(last_col, x,
                      jnp.maximum(pltpu.roll(yr, shift=HWp - 1, axis=1) + x, 0.0))
    up = jnp.where(first_row, x,
                   jnp.maximum(pltpu.roll(yu, shift=W, axis=1) + x, 0.0))
    down = jnp.where(last_row, x,
                     jnp.maximum(pltpu.roll(yd, shift=HWp - W, axis=1) + x, 0.0))

    up_ref[...] = up.astype(up_ref.dtype)
    right_ref[...] = right.astype(right_ref.dtype)
    down_ref[...] = down.astype(down_ref.dtype)
    left_ref[...] = left.astype(left_ref.dtype)


def _vmem_capacity_bytes():
    """Physical VMEM per core; conservative 64 MiB (v7x) fallback."""
    try:
        info = pltpu.get_tpu_info()
        cap = getattr(info, "vmem_capacity_bytes", None)
        if cap:
            return int(cap)
    except Exception:
        pass
    return 64 * _MIB


def _choose_blocking(B, HW, in_itemsize, out_itemsize):
    """Generation-aware tiling for a pure 1R+4W streaming kernel.

    Returns (Bb, B_pad, HWp, steps, vmem_limit_bytes)."""
    HWp = max(_LANE, pl.cdiv(HW, _LANE) * _LANE)           # lane-dense stores
    # Sublane packing granularity (8 f32 / 16 bf16 / 32 int8) of the narrowest
    # dtype touching the row-blocked axis.
    sub = 8 * max(1, 4 // min(in_itemsize, out_itemsize))
    B_sub = pl.cdiv(B, sub) * sub

    vmem_phys = _vmem_capacity_bytes()
    if vmem_phys <= 64 * _MIB:       # v7x-class: 64 MiB physical per core
        total_cap, block_target = 48 * _MIB, 4 * _MIB
    else:                            # v5e / v6e: 128 MiB physical
        total_cap, block_target = 80 * _MIB, 6 * _MIB

    # Per grid step, double buffered: 1 input block + 4 output blocks of
    # (Bb, HWp) plus the lane-padded (Bb, 128) parameter block.
    per_row = in_itemsize * (HWp + _LANE) + 4 * out_itemsize * HWp
    bb_cap = min(block_target // (HWp * max(in_itemsize, out_itemsize)),
                 total_cap // (2 * per_row))
    bb_cap = max(sub, (bb_cap // sub) * sub)
    bb_cap = min(bb_cap, B_sub)

    steps = pl.cdiv(B_sub, bb_cap)
    if B_sub >= 2 * sub:
        steps = max(steps, 2)        # feed both v7x TensorCores
    if steps > 1 and steps % 2:
        steps += 1                   # even split across the 2 TCs
    Bb = pl.cdiv(pl.cdiv(B_sub, steps), sub) * sub
    B_pad = steps * Bb

    vmem_limit = int(min(vmem_phys - 4 * _MIB,
                         2 * Bb * per_row + 16 * _MIB))
    return Bb, B_pad, HWp, steps, vmem_limit


@functools.partial(jax.jit, static_argnames=("out_dtype",))
def irnn_layer_forward(x, params, out_dtype=None):
    """x: (N, C, H, W). params: 8 arrays of shape (C,).

    Returns (top_up, top_right, top_down, top_left) — same order as the
    PyTorch module. `out_dtype` (e.g. jnp.bfloat16) optionally halves the
    write traffic (4W of 1R+4W) if downstream consumers accept it."""
    N, C, H, W = x.shape
    B, HW = N * C, H * W
    in_itemsize = x.dtype.itemsize
    out_dtype = x.dtype if out_dtype is None else jnp.dtype(out_dtype)
    out_itemsize = jnp.dtype(out_dtype).itemsize

    wl, bl, wr, br, wu, bu, wd, bd = params
    # One (B, 8) parameter table aligned with the flattened (n, c) slab axis.
    p = jnp.stack([wl, bl, wr, br, wu, bu, wd, bd], axis=1).astype(x.dtype)  # (C, 8)
    p = jnp.tile(p, (N, 1))                                                  # (B, 8)
    # TODO(synk): when C % Bb == 0 the tile could be folded into the param
    # index_map instead of materializing a (B, 8) table; it is tiny (8*B*4 B).

    Bb, B_pad, HWp, steps, vmem_limit = _choose_blocking(
        B, HW, in_itemsize, out_itemsize)

    # Lane-dense layout: full (H, W) plane on the lane axis, padded to 128x.
    xf = x.reshape(B, HW)
    if HWp != HW:
        xf = jnp.pad(xf, ((0, 0), (0, HWp - HW)))
    if B_pad != B:
        xf = jnp.pad(xf, ((0, B_pad - B), (0, 0)))
        p = jnp.pad(p, ((0, B_pad - B), (0, 0)))

    row_spec = pl.BlockSpec((Bb, HWp), lambda i: (i, 0))
    p_spec = pl.BlockSpec((Bb, 8), lambda i: (i, 0))
    out_sds = jax.ShapeDtypeStruct((B_pad, HWp), out_dtype)

    cost = pl.CostEstimate(
        flops=20 * B_pad * HWp,                           # 4x (FMA + add + max + sel)
        transcendentals=0,
        bytes_accessed=(B_pad * HWp * (in_itemsize + 4 * out_itemsize)
                        + B_pad * 8 * in_itemsize),       # 1 read + 4 writes
    )

    kernel = functools.partial(_irnn_kernel, W=W, HW=HW, HWp=HWp)

    tu, tr, td, tl = pl.pallas_call(
        kernel,
        out_shape=(out_sds, out_sds, out_sds, out_sds),
        grid_spec=pltpu.PrefetchScalarGridSpec(
            num_scalar_prefetch=0,
            grid=(steps,),
            in_specs=[p_spec, row_spec],
            out_specs=[row_spec, row_spec, row_spec, row_spec],
        ),
        compiler_params=pltpu.CompilerParams(
            dimension_semantics=("parallel",),
            vmem_limit_bytes=vmem_limit,
        ),
        cost_estimate=cost,
    )(p, xf)

    def back(a):
        return a[:B, :HW].reshape(N, C, H, W)

    return back(tu), back(tr), back(td), back(tl)


def irnn_layer_reference(x, params):
    """Plain-JAX reference mirroring the PyTorch forward exactly."""
    wl, bl, wr, br, wu, bu, wd, bd = params
    relu = jax.nn.relu

    def conv(inp, w, b):  # depthwise 1x1 conv
        return inp * w[None, :, None, None] + b[None, :, None, None]

    _, _, H, W = x.shape
    tl = x.at[:, :, :, 1:].set(relu(conv(x, wl, bl)[:, :, :, :W - 1] + x[:, :, :, 1:]))
    tr = x.at[:, :, :, :-1].set(relu(conv(x, wr, br)[:, :, :, 1:] + x[:, :, :, :W - 1]))
    tu = x.at[:, :, 1:, :].set(relu(conv(x, wu, bu)[:, :, :H - 1, :] + x[:, :, 1:, :]))
    td = x.at[:, :, :-1, :].set(relu(conv(x, wd, bd)[:, :, 1:, :] + x[:, :, :H - 1, :]))
    return tu, tr, td, tl


def make_params(key, in_channels):
    # PyTorch Conv2d default init: U(-1/sqrt(fan_in), 1/sqrt(fan_in));
    # fan_in = 1 for a depthwise 1x1 conv.
    keys = jax.random.split(key, 8)
    bound = 1.0
    return tuple(
        jax.random.uniform(k, (in_channels,), jnp.float32, -bound, bound)
        for k in keys
    )


if __name__ == "__main__":
    N, C, H, W = 2, 4, 16, 16
    key = jax.random.PRNGKey(0)
    kx, kp = jax.random.split(key)
    x = jax.random.normal(kx, (N, C, H, W), jnp.float32)
    params = make_params(kp, C)

    outs = jax.block_until_ready(irnn_layer_forward(x, params))
    refs = irnn_layer_reference(x, params)
    for o, r in zip(outs, refs):
        assert o.shape == (N, C, H, W)
        assert jnp.allclose(o, r, atol=1e-5, rtol=1e-5), "mismatch vs reference"

    print("KERNEL_OK")
</pallas_src>

<mosaic_0001>
module attributes {stable_mosaic.version = 11 : i64} {
  func.func @_irnn_kernel(%arg0: i32, %arg1: memref<8x8xf32, #tpu.memory_space<vmem>>, %arg2: memref<8x256xf32, #tpu.memory_space<vmem>>, %arg3: memref<8x256xf32, #tpu.memory_space<vmem>>, %arg4: memref<8x256xf32, #tpu.memory_space<vmem>>, %arg5: memref<8x256xf32, #tpu.memory_space<vmem>>, %arg6: memref<8x256xf32, #tpu.memory_space<vmem>>) attributes {dimension_semantics = [#tpu.dimension_semantics<parallel>], iteration_bounds = array<i64: 1>, scalar_prefetch = 0 : i64, scratch_operands = 0 : i64, tpu.core_type = #tpu.core_type<tc>, window_params = [{transform_indices = @transform_0, window_bounds = array<i64: 8, 8>}, {transform_indices = @transform_1, window_bounds = array<i64: 8, 256>}, {transform_indices = @transform_2, window_bounds = array<i64: 8, 256>}, {transform_indices = @transform_3, window_bounds = array<i64: 8, 256>}, {transform_indices = @transform_4, window_bounds = array<i64: 8, 256>}, {transform_indices = @transform_5, window_bounds = array<i64: 8, 256>}]} {
    %c0 = arith.constant 0 : index
    %c0_0 = arith.constant 0 : index
    %0 = vector.load %arg2[%c0, %c0_0] : memref<8x256xf32, #tpu.memory_space<vmem>>, vector<8x256xf32>
    %c0_1 = arith.constant 0 : index
    %c0_2 = arith.constant 0 : index
    %1 = vector.load %arg1[%c0_1, %c0_2] : memref<8x8xf32, #tpu.memory_space<vmem>>, vector<8x8xf32>
    %2 = vector.extract_strided_slice %1 {offsets = [0, 0], sizes = [8, 1], strides = [1, 1]} : vector<8x8xf32> to vector<8x1xf32>
    %3 = vector.extract_strided_slice %1 {offsets = [0, 1], sizes = [8, 1], strides = [1, 1]} : vector<8x8xf32> to vector<8x1xf32>
    %4 = vector.extract_strided_slice %1 {offsets = [0, 2], sizes = [8, 1], strides = [1, 1]} : vector<8x8xf32> to vector<8x1xf32>
    %5 = vector.extract_strided_slice %1 {offsets = [0, 3], sizes = [8, 1], strides = [1, 1]} : vector<8x8xf32> to vector<8x1xf32>
    %6 = vector.extract_strided_slice %1 {offsets = [0, 4], sizes = [8, 1], strides = [1, 1]} : vector<8x8xf32> to vector<8x1xf32>
    %7 = vector.extract_strided_slice %1 {offsets = [0, 5], sizes = [8, 1], strides = [1, 1]} : vector<8x8xf32> to vector<8x1xf32>
    %8 = vector.extract_strided_slice %1 {offsets = [0, 6], sizes = [8, 1], strides = [1, 1]} : vector<8x8xf32> to vector<8x1xf32>
    %9 = vector.extract_strided_slice %1 {offsets = [0, 7], sizes = [8, 1], strides = [1, 1]} : vector<8x8xf32> to vector<8x1xf32>
    %10 = tpu.iota {dimensions = array<i32: 1>} : vector<1x256xi32>
    %c16_i32 = arith.constant 16 : i32
    %c0_i32 = arith.constant 0 : i32
    %11 = arith.cmpi eq, %c16_i32, %c0_i32 : i32
    %c1_i32 = arith.constant 1 : i32
    %12 = arith.select %11, %c1_i32, %c16_i32 : i32
    %13 = vector.broadcast %12 : i32 to vector<1x256xi32>
    %14 = arith.remsi %10, %13 : vector<1x256xi32>
    %c0_i32_3 = arith.constant 0 : i32
    %15 = vector.broadcast %c0_i32_3 : i32 to vector<1x256xi32>
    %16 = arith.cmpi ne, %14, %15 : vector<1x256xi32>
    %c0_i32_4 = arith.constant 0 : i32
    %17 = vector.broadcast %c0_i32_4 : i32 to vector<1x256xi32>
    %18 = arith.cmpi slt, %14, %17 : vector<1x256xi32>
    %c0_i32_5 = arith.constant 0 : i32
    %19 = arith.cmpi slt, %12, %c0_i32_5 : i32
    %20 = vector.broadcast %19 : i1 to vector<1x256xi1>
    %21 = vector.broadcast %20 : vector<1x256xi1> to vector<1x256xi1>
    %22 = arith.xori %18, %21 : vector<1x256xi1>
    %23 = arith.andi %22, %16 : vector<1x256xi1>
    %24 = vector.broadcast %12 : i32 to vector<1x256xi32>
    %25 = arith.addi %14, %24 : vector<1x256xi32>
    %26 = arith.select %23, %25, %14 : vector<1x256xi1>, vector<1x256xi32>
    %c0_i32_6 = arith.constant 0 : i32
    %27 = vector.broadcast %c0_i32_6 : i32 to vector<1x256xi32>
    %28 = arith.cmpi eq, %26, %27 : vector<1x256xi32>
    %c15_i32 = arith.constant 15 : i32
    %29 = vector.broadcast %c15_i32 : i32 to vector<1x256xi32>
    %30 = arith.cmpi eq, %26, %29 : vector<1x256xi32>
    %c16_i32_7 = arith.constant 16 : i32
    %31 = vector.broadcast %c16_i32_7 : i32 to vector<1x256xi32>
    %32 = arith.cmpi slt, %10, %31 : vector<1x256xi32>
    %c240_i32 = arith.constant 240 : i32
    %33 = vector.broadcast %c240_i32 : i32 to vector<1x256xi32>
    %34 = arith.cmpi sge, %10, %33 : vector<1x256xi32>
    %35 = vector.broadcast %2 : vector<8x1xf32> to vector<8x256xf32>
    %36 = arith.mulf %35, %0 : vector<8x256xf32>
    %37 = vector.broadcast %3 : vector<8x1xf32> to vector<8x256xf32>
    %38 = arith.addf %36, %37 : vector<8x256xf32>
    %39 = vector.broadcast %4 : vector<8x1xf32> to vector<8x256xf32>
    %40 = arith.mulf %39, %0 : vector<8x256xf32>
    %41 = vector.broadcast %5 : vector<8x1xf32> to vector<8x256xf32>
    %42 = arith.addf %40, %41 : vector<8x256xf32>
    %43 = vector.broadcast %6 : vector<8x1xf32> to vector<8x256xf32>
    %44 = arith.mulf %43, %0 : vector<8x256xf32>
    %45 = vector.broadcast %7 : vector<8x1xf32> to vector<8x256xf32>
    %46 = arith.addf %44, %45 : vector<8x256xf32>
    %47 = vector.broadcast %8 : vector<8x1xf32> to vector<8x256xf32>
    %48 = arith.mulf %47, %0 : vector<8x256xf32>
    %49 = vector.broadcast %9 : vector<8x1xf32> to vector<8x256xf32>
    %50 = arith.addf %48, %49 : vector<8x256xf32>
    %c1_i32_8 = arith.constant 1 : i32
    %51 = tpu.dynamic_rotate %38 by %c1_i32_8 dim 1 : vector<8x256xf32>, i32 -> vector<8x256xf32>
    %52 = arith.addf %51, %0 : vector<8x256xf32>
    %cst = arith.constant 0.000000e+00 : f32
    %53 = vector.broadcast %cst : f32 to vector<8x256xf32>
    %54 = arith.maximumf %52, %53 : vector<8x256xf32>
    %55 = vector.shape_cast %28 : vector<1x256xi1> to vector<1x256xi1>
    %56 = vector.broadcast %55 : vector<1x256xi1> to vector<8x256xi1>
    %57 = arith.select %56, %0, %54 : vector<8x256xi1>, vector<8x256xf32>
    %c255_i32 = arith.constant 255 : i32
    %58 = tpu.dynamic_rotate %42 by %c255_i32 dim 1 : vector<8x256xf32>, i32 -> vector<8x256xf32>
    %59 = arith.addf %58, %0 : vector<8x256xf32>
    %cst_9 = arith.constant 0.000000e+00 : f32
    %60 = vector.broadcast %cst_9 : f32 to vector<8x256xf32>
    %61 = arith.maximumf %59, %60 : vector<8x256xf32>
    %62 = vector.shape_cast %30 : vector<1x256xi1> to vector<1x256xi1>
    %63 = vector.broadcast %62 : vector<1x256xi1> to vector<8x256xi1>
    %64 = arith.select %63, %0, %61 : vector<8x256xi1>, vector<8x256xf32>
    %c16_i32_10 = arith.constant 16 : i32
    %65 = tpu.dynamic_rotate %46 by %c16_i32_10 dim 1 : vector<8x256xf32>, i32 -> vector<8x256xf32>
    %66 = arith.addf %65, %0 : vector<8x256xf32>
    %cst_11 = arith.constant 0.000000e+00 : f32
    %67 = vector.broadcast %cst_11 : f32 to vector<8x256xf32>
    %68 = arith.maximumf %66, %67 : vector<8x256xf32>
    %69 = vector.shape_cast %32 : vector<1x256xi1> to vector<1x256xi1>
    %70 = vector.broadcast %69 : vector<1x256xi1> to vector<8x256xi1>
    %71 = arith.select %70, %0, %68 : vector<8x256xi1>, vector<8x256xf32>
    %c240_i32_12 = arith.constant 240 : i32
    %72 = tpu.dynamic_rotate %50 by %c240_i32_12 dim 1 : vector<8x256xf32>, i32 -> vector<8x256xf32>
    %73 = arith.addf %72, %0 : vector<8x256xf32>
    %cst_13 = arith.constant 0.000000e+00 : f32
    %74 = vector.broadcast %cst_13 : f32 to vector<8x256xf32>
    %75 = arith.maximumf %73, %74 : vector<8x256xf32>
    %76 = vector.shape_cast %34 : vector<1x256xi1> to vector<1x256xi1>
    %77 = vector.broadcast %76 : vector<1x256xi1> to vector<8x256xi1>
    %78 = arith.select %77, %0, %75 : vector<8x256xi1>, vector<8x256xf32>
    %c0_14 = arith.constant 0 : index
    %c0_15 = arith.constant 0 : index
    %79 = vector.load %arg3[%c0_14, %c0_15] : memref<8x256xf32, #tpu.memory_space<vmem>>, vector<8x256xf32>
    tpu.vector_store %arg3[%c0_14, %c0_15], %71 {strides = array<i32>} : memref<8x256xf32, #tpu.memory_space<vmem>>, vector<8x256xf32>,
    %c0_16 = arith.constant 0 : index
    %c0_17 = arith.constant 0 : index
    %80 = vector.load %arg4[%c0_16, %c0_17] : memref<8x256xf32, #tpu.memory_space<vmem>>, vector<8x256xf32>
    tpu.vector_store %arg4[%c0_16, %c0_17], %64 {strides = array<i32>} : memref<8x256xf32, #tpu.memory_space<vmem>>, vector<8x256xf32>,
    %c0_18 = arith.constant 0 : index
    %c0_19 = arith.constant 0 : index
    %81 = vector.load %arg5[%c0_18, %c0_19] : memref<8x256xf32, #tpu.memory_space<vmem>>, vector<8x256xf32>
    tpu.vector_store %arg5[%c0_18, %c0_19], %78 {strides = array<i32>} : memref<8x256xf32, #tpu.memory_space<vmem>>, vector<8x256xf32>,
    %c0_20 = arith.constant 0 : index
    %c0_21 = arith.constant 0 : index
    %82 = vector.load %arg6[%c0_20, %c0_21] : memref<8x256xf32, #tpu.memory_space<vmem>>, vector<8x256xf32>
    tpu.vector_store %arg6[%c0_20, %c0_21], %57 {strides = array<i32>} : memref<8x256xf32, #tpu.memory_space<vmem>>, vector<8x256xf32>,
    return
  }
  func.func @transform_0(%arg0: i32) -> (i32, i32) {
    %c0_i32 = arith.constant 0 : i32
    %c0_i32_0 = arith.constant 0 : i32
    return %arg0, %c0_i32 : i32, i32
  }
  func.func @transform_1(%arg0: i32) -> (i32, i32) {
    %c0_i32 = arith.constant 0 : i32
    %c0_i32_0 = arith.constant 0 : i32
    return %arg0, %c0_i32 : i32, i32
  }
  func.func @transform_2(%arg0: i32) -> (i32, i32) {
    %c0_i32 = arith.constant 0 : i32
    %c0_i32_0 = arith.constant 0 : i32
    return %arg0, %c0_i32 : i32, i32
  }
  func.func @transform_3(%arg0: i32) -> (i32, i32) {
    %c0_i32 = arith.constant 0 : i32
    %c0_i32_0 = arith.constant 0 : i32
    return %arg0, %c0_i32 : i32, i32
  }
  func.func @transform_4(%arg0: i32) -> (i32, i32) {
    %c0_i32 = arith.constant 0 : i32
    %c0_i32_0 = arith.constant 0 : i32
    return %arg0, %c0_i32 : i32, i32
  }
  func.func @transform_5(%arg0: i32) -> (i32, i32) {
    %c0_i32 = arith.constant 0 : i32
    %c0_i32_0 = arith.constant 0 : i32
    return %arg0, %c0_i32 : i32, i32
  }
}

</mosaic_0001>

<llo_original>
// kernel: irnn_layer_forward.1
$region0: #{irnn_layer_forward.1}
  #allocation0 [shape = 'u32[]', space=smem, size = 0x4, offset = 0x4, fixed_abs, tag = 'smem constant byte address 0x4 - core index']
  #allocation1 [shape = 'u32[72,128]{1,0:T(1,128)}', space=vmem, size = 0x9000, scoped, tag = 'internal scratch']
  %s0 = inlined_call_operand.vmem [shape: f32[8,8], index: 0, kind: input, shape index: {}]
  %s1 = inlined_call_operand.vmem [shape: f32[8,256], index: 1, kind: input, shape index: {}]
  %s2 = inlined_call_operand.vmem [shape: f32[8,256], index: 2, kind: output, shape index: {0}]
  %s3 = inlined_call_operand.vmem [shape: f32[8,256], index: 3, kind: output, shape index: {1}]
  %s4 = inlined_call_operand.vmem [shape: f32[8,256], index: 4, kind: output, shape index: {2}]
  %s5 = inlined_call_operand.vmem [shape: f32[8,256], index: 5, kind: output, shape index: {3}]
  %6 = xla_tuple %s2, %s3, %s4, %s5
  %s7 = sld [smem:[#allocation0]]
  $region42: #{irnn_layer_forward.1} parent=0
    _
  %s9 = ssub.s32 1, %s7
  %s10 = scalar_select 0, %s9, %s7
  // Predicated region
  $region2: #{irnn_layer_forward.1} parent=0 // pred_check
    _
  $region3: #{irnn_layer_forward.1} parent=0 // pred_check_branch
    %12 = sbr.rel (0) target = $region5
  $region4: #{irnn_layer_forward.1} parent=0 // pred_region
    _
  $region5: #{irnn_layer_forward.1} parent=0 // pred_fallthru
    _
  // Predicated region
  $region6: #{irnn_layer_forward.1} parent=0 // pred_check
    _
  $region7: #{irnn_layer_forward.1} parent=0 // pred_check_branch
    %14 = sbr.rel (0) target = $region9
  $region8: #{irnn_layer_forward.1} parent=0 // pred_region
    _
  $region9: #{irnn_layer_forward.1} parent=0 // pred_fallthru
    _
  %v15 = vld [vmem:[%s1] sm:$0xff]
  %v16 = vld [vmem:[%s1 + $0x8] sm:$0xff]
  %v17 = vld [vmem:[%s0] sm:$0xff]
  %v18 = vlaneseq
  %v19 = vand.u32 %v18, 127
  %v20 = vadd.s32 %v19, 128
  %vm21 = vcmp.lt.s32.totalorder %v19, 0
  %v22 = vsub.s32 0, %v19
  %v23 = vsel %vm21, %v22, %v19
  %v24 = vshrl.u32 %v23, 4
  %v25 = vand.u32 %v23, 15
  %v26 = vsub.s32 0, %v25
  %v27 = vsel %vm21, %v26, %v25
  %vm28 = vcmp.lt.s32.totalorder %v20, 0
  %v29 = vsub.s32 0, %v20
  %v30 = vsel %vm28, %v29, %v20
  %v31 = vshrl.u32 %v30, 4
  %v32 = vand.u32 %v30, 15
  %v33 = vsub.s32 0, %v32
  %v34 = vsel %vm28, %v33, %v32
  %vm35 = vcmp.ne.s32.totalorder %v27, 0
  %vm36 = vcmp.ne.s32.totalorder %v34, 0
  %vm37 = vcmp.lt.s32.totalorder %v27, 0
  %vm38 = vcmp.lt.s32.totalorder %v34, 0
  %vm39 = vmand %vm37, %vm35
  %vm40 = vmand %vm38, %vm36
  %v41 = vadd.s32 %v27, 16
  %v42 = vadd.s32 %v34, 16
  %v43 = vsel %vm39, %v41, %v27
  %v44 = vsel %vm40, %v42, %v34
  %vm45 = vcmp.eq.s32.totalorder %v43, 0
  %vm46 = vcmp.eq.s32.totalorder %v44, 0
  %vm47 = vcmp.eq.s32.totalorder %v43, 15
  %vm48 = vcmp.eq.s32.totalorder %v44, 15
  %vm49 = vcmp.lt.s32.totalorder %v19, 16
  %vm50 = vcmp.lt.s32.totalorder %v20, 16
  %vm51 = vcmp.ge.s32.totalorder %v19, 240
  %vm52 = vcmp.ge.s32.totalorder %v20, 240
  %54 = vset.pattern.permute.xlu0 0
  %55 = vperm.xlu0 %54, %v17
  %v56 = vpop.permute.xlu0 %55
  %v58 = vmul.f32 %v56, %v15
  %v59 = vmul.f32 %v56, %v16
  %60 = vset.pattern.permute.xlu0 1
  %61 = vperm.xlu0 %60, %v17
  %v62 = vpop.permute.xlu0 %61
  %v64 = vadd.f32 %v58, %v62
  %v65 = vadd.f32 %v59, %v62
  %66 = vset.pattern.permute.xlu0 2
  %67 = vperm.xlu0 %66, %v17
  %v68 = vpop.permute.xlu0 %67
  %v70 = vmul.f32 %v68, %v15
  %v71 = vmul.f32 %v68, %v16
  %72 = vset.pattern.permute.xlu0 3
  %73 = vperm.xlu0 %72, %v17
  %v74 = vpop.permute.xlu0 %73
  %v76 = vadd.f32 %v70, %v74
  %v77 = vadd.f32 %v71, %v74
  %78 = vset.pattern.permute.xlu0 4
  %79 = vperm.xlu0 %78, %v17
  %v80 = vpop.permute.xlu0 %79
  %v82 = vmul.f32 %v80, %v15
  %v83 = vmul.f32 %v80, %v16
  %84 = vset.pattern.permute.xlu0 5
  %85 = vperm.xlu0 %84, %v17
  %v86 = vpop.permute.xlu0 %85
  %v88 = vadd.f32 %v82, %v86
  %v89 = vadd.f32 %v83, %v86
  %90 = vset.pattern.permute.xlu0 6
  %91 = vperm.xlu0 %90, %v17
  %v92 = vpop.permute.xlu0 %91
  %v94 = vmul.f32 %v92, %v15
  %v95 = vmul.f32 %v92, %v16
  %96 = vset.pattern.permute.xlu0 7
  %97 = vperm.xlu0 %96, %v17
  %v98 = vpop.permute.xlu0 %97
  %v100 = vadd.f32 %v94, %v98
  %v101 = vadd.f32 %v95, %v98
  %102 = vrot.lane.b32.xlu0 %v64, 1
  %v103 = vpop.permute.xlu0 %102
  %104 = vrot.lane.b32.xlu0 %v65, 1
  %v105 = vpop.permute.xlu0 %104
  %vm106 = vcmp.lt.s32.totalorder %v19, 1
  %v107 = vsel %vm106, %v103, %v105
  %v108 = vsel %vm106, %v105, %v103
  %v109 = vadd.f32 %v108, %v15
  %v110 = vadd.f32 %v107, %v16
  %v111 = vmax.f32 %v109, 0.0
  %v112 = vmax.f32 %v110, 0.0
  %v113 = vsel %vm45, 1, 0
  %v114 = vsel %vm46, 1, 0
  %vm115 = vcmp.eq.s32.totalorder %v113, 1
  %vm116 = vcmp.eq.s32.totalorder %v114, 1
  %v117 = vsel %vm115, %v15, %v111
  %v118 = vsel %vm116, %v16, %v112
  %119 = vrot.lane.b32.xlu0 %v76, 127
  %v120 = vpop.permute.xlu0 %119
  %121 = vrot.lane.b32.xlu0 %v77, 127
  %v122 = vpop.permute.xlu0 %121
  %vm123 = vcmp.lt.s32.totalorder %v19, 127
  %v124 = vsel %vm123, %v120, %v122
  %v125 = vsel %vm123, %v122, %v120
  %v126 = vadd.f32 %v124, %v15
  %v127 = vadd.f32 %v125, %v16
  %v128 = vmax.f32 %v126, 0.0
  %v129 = vmax.f32 %v127, 0.0
  %v130 = vsel %vm47, 1, 0
  %v131 = vsel %vm48, 1, 0
  %vm132 = vcmp.eq.s32.totalorder %v130, 1
  %vm133 = vcmp.eq.s32.totalorder %v131, 1
  %v134 = vsel %vm132, %v15, %v128
  %v135 = vsel %vm133, %v16, %v129
  %136 = vrot.lane.b32.xlu0 %v88, 16
  %v137 = vpop.permute.xlu0 %136
  %138 = vrot.lane.b32.xlu0 %v89, 16
  %v139 = vpop.permute.xlu0 %138
  %v140 = vsel %vm49, %v137, %v139
  %v141 = vsel %vm49, %v139, %v137
  %v142 = vadd.f32 %v141, %v15
  %v143 = vadd.f32 %v140, %v16
  %v144 = vmax.f32 %v142, 0.0
  %v145 = vmax.f32 %v143, 0.0
  %v146 = vsel %vm49, 1, 0
  %v147 = vsel %vm50, 1, 0
  %vm148 = vcmp.eq.s32.totalorder %v146, 1
  %vm149 = vcmp.eq.s32.totalorder %v147, 1
  %v150 = vsel %vm148, %v15, %v144
  %v151 = vsel %vm149, %v16, %v145
  %152 = vrot.lane.b32.xlu0 %v100, 112
  %v153 = vpop.permute.xlu0 %152
  %154 = vrot.lane.b32.xlu0 %v101, 112
  %v155 = vpop.permute.xlu0 %154
  %vm156 = vcmp.lt.s32.totalorder %v19, 112
  %v157 = vsel %vm156, %v153, %v155
  %v158 = vsel %vm156, %v155, %v153
  %v159 = vadd.f32 %v157, %v15
  %v160 = vadd.f32 %v158, %v16
  %v161 = vmax.f32 %v159, 0.0
  %v162 = vmax.f32 %v160, 0.0
  %v163 = vsel %vm51, 1, 0
  %v164 = vsel %vm52, 1, 0
  %vm165 = vcmp.eq.s32.totalorder %v163, 1
  %vm166 = vcmp.eq.s32.totalorder %v164, 1
  %v167 = vsel %vm165, %v15, %v161
  %v168 = vsel %vm166, %v16, %v162
  %169 = vst [vmem:[%s2] sm:$0xff] %v150
  %170 = vst [vmem:[%s2 + $0x8] sm:$0xff] %v151
  %171 = vst [vmem:[%s3] sm:$0xff] %v134
  %172 = vst [vmem:[%s3 + $0x8] sm:$0xff] %v135
  %173 = vst [vmem:[%s4] sm:$0xff] %v167
  %174 = vst [vmem:[%s4 + $0x8] sm:$0xff] %v168
  %175 = vst [vmem:[%s5] sm:$0xff] %v117
  %176 = vst [vmem:[%s5 + $0x8] sm:$0xff] %v118
  // Predicated region
  $region10: #{irnn_layer_forward.1} parent=0 // pred_check
    _
  $region11: #{irnn_layer_forward.1} parent=0 // pred_check_branch
    %178 = sbr.rel (0) target = $region13
  $region12: #{irnn_layer_forward.1} parent=0 // pred_region
    _
  $region13: #{irnn_layer_forward.1} parent=0 // pred_fallthru
    _
  // Predicated region
  $region14: #{irnn_layer_forward.1} parent=0 // pred_check
    _
  $region15: #{irnn_layer_forward.1} parent=0 // pred_check_branch
    %180 = sbr.rel (0) target = $region17
  $region16: #{irnn_layer_forward.1} parent=0 // pred_region
    _
  $region17: #{irnn_layer_forward.1} parent=0 // pred_fallthru
    _
  // Predicated region
  $region18: #{irnn_layer_forward.1} parent=0 // pred_check
    _
  $region19: #{irnn_layer_forward.1} parent=0 // pred_check_branch
    %182 = sbr.rel (0) target = $region21
  $region20: #{irnn_layer_forward.1} parent=0 // pred_region
    _
  $region21: #{irnn_layer_forward.1} parent=0 // pred_fallthru
    _
  // Predicated region
  $region22: #{irnn_layer_forward.1} parent=0 // pred_check
    _
  $region23: #{irnn_layer_forward.1} parent=0 // pred_check_branch
    %184 = sbr.rel (0) target = $region25
  $region24: #{irnn_layer_forward.1} parent=0 // pred_region
    _
  $region25: #{irnn_layer_forward.1} parent=0 // pred_fallthru
    _
  // Predicated region
  $region26: #{irnn_layer_forward.1} parent=0 // pred_check
    _
  $region27: #{irnn_layer_forward.1} parent=0 // pred_check_branch
    %186 = sbr.rel (0) target = $region29
  $region28: #{irnn_layer_forward.1} parent=0 // pred_region
    _
  $region29: #{irnn_layer_forward.1} parent=0 // pred_fallthru
    _
  // Predicated region
  $region30: #{irnn_layer_forward.1} parent=0 // pred_check
    _
  $region31: #{irnn_layer_forward.1} parent=0 // pred_check_branch
    %188 = sbr.rel (0) target = $region33
  $region32: #{irnn_layer_forward.1} parent=0 // pred_region
    _
  $region33: #{irnn_layer_forward.1} parent=0 // pred_fallthru
    _
  // Predicated region
  $region34: #{irnn_layer_forward.1} parent=0 // pred_check
    _
  $region35: #{irnn_layer_forward.1} parent=0 // pred_check_branch
    %190 = sbr.rel (0) target = $region37
  $region36: #{irnn_layer_forward.1} parent=0 // pred_region
    _
  $region37: #{irnn_layer_forward.1} parent=0 // pred_fallthru
    _
  // Predicated region
  $region38: #{irnn_layer_forward.1} parent=0 // pred_check
    _
  $region39: #{irnn_layer_forward.1} parent=0 // pred_check_branch
    %192 = sbr.rel (0) target = $region41
  $region40: #{irnn_layer_forward.1} parent=0 // pred_region
    _
  $region41: #{irnn_layer_forward.1} parent=0 // pred_fallthru
    _

</llo_original>
